<compile_context>
chip_gen: v7x
topology: tpu7x:2x2x1
jax: 0.10.0
libtpu: 0.0.40
codegen_flags: <defaults>
</compile_context>

<pallas_src>
import functools

import jax
import jax.numpy as jnp
from jax.experimental import pallas as pl
from jax.experimental.pallas import tpu as pltpu


def _round_up(x, m):
    return (x + m - 1) // m * m


def _whuber_kernel(x_ref, t_ref, w_ref, o_ref, acc_ref, *, gamma, inv_count):
    i = pl.program_id(0)
    j = pl.program_id(1)
    ni = pl.num_programs(0)
    nj = pl.num_programs(1)

    @pl.when((i == 0) & (j == 0))
    def _():
        acc_ref[...] = jnp.zeros_like(acc_ref)

    x = x_ref[...].astype(jnp.float32)
    t = t_ref[...].astype(jnp.float32)
    d = jnp.abs(x - t)
    huber = jnp.where(d < gamma, 0.5 * d * d, gamma * (d - 0.5 * gamma))
    # (tile_rows, 1) weight column lane-broadcast against the (tile_rows, tile_cols) tile.
    hw = huber * w_ref[...].astype(jnp.float32)
    # Per-step partial reduction to a scalar; the XLU/VALU work is hidden under
    # the HBM-bound input DMA.
    acc_ref[...] = acc_ref[...] + jnp.sum(hw)

    @pl.when((i == ni - 1) & (j == nj - 1))
    def _():
        o_ref[...] = acc_ref[...] * inv_count


def weighted_huber_loss(inp, target, channel_weight, gamma=1.0, reduction="mean"):
    assert reduction in ("mean", "sum")
    # TODO(synk): reduction='none' (full-size elementwise output) not implemented.
    n, c, h, w = inp.shape
    assert channel_weight.shape == (c,)

    rows, cols = n * c, h * w
    x2 = inp.reshape(rows, cols)
    t2 = target.reshape(rows, cols)

    # Tiny per-row weight column: weight[row] = channel_weight[row % c].
    wcol = jnp.broadcast_to(
        channel_weight.astype(jnp.float32)[None, :], (n, c)
    ).reshape(rows, 1)

    # --- tiling ------------------------------------------------------------
    # Per-block budget ~4 MiB of f32 so that (2 streams x 2 buffers) stays well
    # under the 32 MiB scoped-VMEM limit (v5e/v6e/v7x safe).
    target_block_bytes = 4 * 1024 * 1024

    cols_p = _round_up(cols, 128)
    max_tile_cols = max(128, (target_block_bytes // (8 * 4)) // 128 * 128)
    tile_cols = min(cols_p, max_tile_cols)
    cols_p = _round_up(cols_p, tile_cols)

    max_tile_rows = max(8, (target_block_bytes // (tile_cols * 4)) // 8 * 8)
    tile_rows = min(max_tile_rows, _round_up(rows, 8))
    rows_p = _round_up(rows, tile_rows)

    if cols_p != cols or rows_p != rows:
        x2 = jnp.pad(x2, ((0, rows_p - rows), (0, cols_p - cols)))
        t2 = jnp.pad(t2, ((0, rows_p - rows), (0, cols_p - cols)))
    if rows_p != rows:
        wcol = jnp.pad(wcol, ((0, rows_p - rows), (0, 0)))

    grid = (rows_p // tile_rows, cols_p // tile_cols)
    inv_count = (1.0 / float(rows * cols)) if reduction == "mean" else 1.0

    kernel = functools.partial(
        _whuber_kernel, gamma=float(gamma), inv_count=float(inv_count)
    )

    out = pl.pallas_call(
        kernel,
        out_shape=jax.ShapeDtypeStruct((1, 1), jnp.float32),
        grid_spec=pltpu.PrefetchScalarGridSpec(
            num_scalar_prefetch=0,
            grid=grid,
            in_specs=[
                pl.BlockSpec((tile_rows, tile_cols), lambda i, j: (i, j)),
                pl.BlockSpec((tile_rows, tile_cols), lambda i, j: (i, j)),
                pl.BlockSpec((tile_rows, 1), lambda i, j: (i, 0)),
            ],
            out_specs=pl.BlockSpec((1, 1), lambda i, j: (0, 0)),
            scratch_shapes=[pltpu.VMEM((1, 1), jnp.float32)],
        ),
        compiler_params=pltpu.CompilerParams(
            dimension_semantics=("arbitrary", "arbitrary"),
            vmem_limit_bytes=32 * 1024 * 1024,
        ),
    )(x2, t2, wcol)
    return out[0, 0]


class WeightedHuberLoss:
    """JAX/Pallas port of nunif's WeightedHuberLoss (forward only)."""

    def __init__(self, channel_weight, gamma=1.0, reduction="mean"):
        self.channel_weight = channel_weight
        self.gamma = gamma
        self.reduction = reduction

    def __call__(self, inp, target):
        ch = inp.shape[1]
        assert self.channel_weight.shape[0] == ch
        return weighted_huber_loss(
            inp, target, self.channel_weight,
            gamma=self.gamma, reduction=self.reduction,
        )


def _reference(inp, target, channel_weight, gamma):
    d = jnp.abs(inp - target)
    huber = jnp.where(d < gamma, 0.5 * d * d, gamma * (d - 0.5 * gamma))
    w = channel_weight.reshape(1, -1, 1, 1)
    return jnp.mean(huber * w)


if __name__ == "__main__":
    key = jax.random.PRNGKey(0)
    k1, k2 = jax.random.split(key)

    N, C, H, W = 2, 4, 16, 16
    x = jax.random.normal(k1, (N, C, H, W), dtype=jnp.float32)
    t = jax.random.normal(k2, (N, C, H, W), dtype=jnp.float32)
    channel_weight = jnp.array([1.0, 0.5, 2.0, 0.25], dtype=jnp.float32)

    mod = WeightedHuberLoss(channel_weight, gamma=1.0, reduction="mean")
    loss = mod(x, t)
    loss = jax.block_until_ready(loss)

    ref = _reference(x, t, channel_weight, 1.0)
    assert jnp.allclose(loss, ref, rtol=1e-5, atol=1e-6), (loss, ref)

    print("KERNEL_OK")
</pallas_src>

<mosaic_0001>
module attributes {stable_mosaic.version = 11 : i64} {
  func.func @_whuber_kernel(%arg0: i32, %arg1: i32, %arg2: memref<8x256xf32, #tpu.memory_space<vmem>>, %arg3: memref<8x256xf32, #tpu.memory_space<vmem>>, %arg4: memref<8x1xf32, #tpu.memory_space<vmem>>, %arg5: memref<1x1xf32, #tpu.memory_space<vmem>>, %arg6: memref<1x1xf32, #tpu.memory_space<vmem>>) attributes {dimension_semantics = [#tpu.dimension_semantics<arbitrary>, #tpu.dimension_semantics<arbitrary>], iteration_bounds = array<i64: 1, 1>, scalar_prefetch = 0 : i64, scratch_operands = 1 : i64, tpu.core_type = #tpu.core_type<tc>, window_params = [{transform_indices = @transform_0, window_bounds = array<i64: 8, 256>}, {transform_indices = @transform_1, window_bounds = array<i64: 8, 256>}, {transform_indices = @transform_2, window_bounds = array<i64: 8, 1>}, {pipeline_mode = #tpu.pipeline_mode<synchronous>, transform_indices = @transform_3, window_bounds = array<i64: 1, 1>}]} {
    %c0_i32 = arith.constant 0 : i32
    %0 = arith.cmpi eq, %arg0, %c0_i32 : i32
    %c0_i32_0 = arith.constant 0 : i32
    %1 = arith.cmpi eq, %arg1, %c0_i32_0 : i32
    %2 = arith.andi %0, %1 : i1
    %3 = arith.extui %2 : i1 to i32
    %c0_i32_1 = arith.constant 0 : i32
    %4 = arith.cmpi ne, %3, %c0_i32_1 : i32
    scf.if %4 {
      %cst_18 = arith.constant 0.000000e+00 : f32
      %35 = vector.broadcast %cst_18 : f32 to vector<1x1xf32>
      %c0_19 = arith.constant 0 : index
      %c0_20 = arith.constant 0 : index
      %36 = vector.load %arg6[%c0_19, %c0_20] : memref<1x1xf32, #tpu.memory_space<vmem>>, vector<1x1xf32>
      tpu.vector_store %arg6[%c0_19, %c0_20], %35 {strides = array<i32>} : memref<1x1xf32, #tpu.memory_space<vmem>>, vector<1x1xf32>,
    } else {
    }
    %c0 = arith.constant 0 : index
    %c0_2 = arith.constant 0 : index
    %5 = vector.load %arg2[%c0, %c0_2] : memref<8x256xf32, #tpu.memory_space<vmem>>, vector<8x256xf32>
    %c0_3 = arith.constant 0 : index
    %c0_4 = arith.constant 0 : index
    %6 = vector.load %arg3[%c0_3, %c0_4] : memref<8x256xf32, #tpu.memory_space<vmem>>, vector<8x256xf32>
    %7 = arith.subf %5, %6 : vector<8x256xf32>
    %8 = math.absf %7 : vector<8x256xf32>
    %cst = arith.constant 1.000000e+00 : f32
    %9 = vector.broadcast %cst : f32 to vector<8x256xf32>
    %10 = arith.cmpf olt, %8, %9 : vector<8x256xf32>
    %cst_5 = arith.constant 5.000000e-01 : f32
    %11 = vector.broadcast %cst_5 : f32 to vector<8x256xf32>
    %12 = arith.mulf %11, %8 : vector<8x256xf32>
    %13 = arith.mulf %12, %8 : vector<8x256xf32>
    %cst_6 = arith.constant 5.000000e-01 : f32
    %14 = vector.broadcast %cst_6 : f32 to vector<8x256xf32>
    %15 = arith.subf %8, %14 : vector<8x256xf32>
    %cst_7 = arith.constant 1.000000e+00 : f32
    %16 = vector.broadcast %cst_7 : f32 to vector<8x256xf32>
    %17 = arith.mulf %16, %15 : vector<8x256xf32>
    %18 = arith.select %10, %13, %17 : vector<8x256xi1>, vector<8x256xf32>
    %c0_8 = arith.constant 0 : index
    %c0_9 = arith.constant 0 : index
    %19 = vector.load %arg4[%c0_8, %c0_9] : memref<8x1xf32, #tpu.memory_space<vmem>>, vector<8x1xf32>
    %20 = vector.broadcast %19 : vector<8x1xf32> to vector<8x256xf32>
    %21 = arith.mulf %18, %20 : vector<8x256xf32>
    %c0_10 = arith.constant 0 : index
    %c0_11 = arith.constant 0 : index
    %22 = vector.load %arg6[%c0_10, %c0_11] : memref<1x1xf32, #tpu.memory_space<vmem>>, vector<1x1xf32>
    %23 = vector.shape_cast %21 : vector<8x256xf32> to vector<1x8x256xf32>
    %cst_12 = arith.constant dense<0.000000e+00> : vector<1xf32>
    %24 = vector.multi_reduction <add>, %23, %cst_12 [1, 2] : vector<1x8x256xf32> to vector<1xf32>
    %25 = vector.shape_cast %24 : vector<1xf32> to vector<1x1x1xf32>
    %26 = vector.extract %25[0, 0, 0] : f32 from vector<1x1x1xf32>
    %27 = vector.broadcast %26 : f32 to vector<1x1xf32>
    %28 = arith.addf %22, %27 : vector<1x1xf32>
    %c0_13 = arith.constant 0 : index
    %c0_14 = arith.constant 0 : index
    %29 = vector.load %arg6[%c0_13, %c0_14] : memref<1x1xf32, #tpu.memory_space<vmem>>, vector<1x1xf32>
    tpu.vector_store %arg6[%c0_13, %c0_14], %28 {strides = array<i32>} : memref<1x1xf32, #tpu.memory_space<vmem>>, vector<1x1xf32>,
    %c0_i32_15 = arith.constant 0 : i32
    %30 = arith.cmpi eq, %arg0, %c0_i32_15 : i32
    %c0_i32_16 = arith.constant 0 : i32
    %31 = arith.cmpi eq, %arg1, %c0_i32_16 : i32
    %32 = arith.andi %30, %31 : i1
    %33 = arith.extui %32 : i1 to i32
    %c0_i32_17 = arith.constant 0 : i32
    %34 = arith.cmpi ne, %33, %c0_i32_17 : i32
    scf.if %34 {
      %c0_18 = arith.constant 0 : index
      %c0_19 = arith.constant 0 : index
      %35 = vector.load %arg6[%c0_18, %c0_19] : memref<1x1xf32, #tpu.memory_space<vmem>>, vector<1x1xf32>
      %cst_20 = arith.constant 4.8828125E-4 : f32
      %36 = vector.broadcast %cst_20 : f32 to vector<1x1xf32>
      %37 = arith.mulf %35, %36 : vector<1x1xf32>
      %c0_21 = arith.constant 0 : index
      %c0_22 = arith.constant 0 : index
      %38 = vector.load %arg5[%c0_21, %c0_22] : memref<1x1xf32, #tpu.memory_space<vmem>>, vector<1x1xf32>
      tpu.vector_store %arg5[%c0_21, %c0_22], %37 {strides = array<i32>} : memref<1x1xf32, #tpu.memory_space<vmem>>, vector<1x1xf32>,
    } else {
    }
    return
  }
  func.func @transform_0(%arg0: i32, %arg1: i32) -> (i32, i32) {
    %c0_i32 = arith.constant 0 : i32
    return %arg0, %arg1 : i32, i32
  }
  func.func @transform_1(%arg0: i32, %arg1: i32) -> (i32, i32) {
    %c0_i32 = arith.constant 0 : i32
    return %arg0, %arg1 : i32, i32
  }
  func.func @transform_2(%arg0: i32, %arg1: i32) -> (i32, i32) {
    %c0_i32 = arith.constant 0 : i32
    %c0_i32_0 = arith.constant 0 : i32
    return %arg0, %c0_i32 : i32, i32
  }
  func.func @transform_3(%arg0: i32, %arg1: i32) -> (i32, i32) {
    %c0_i32 = arith.constant 0 : i32
    %c0_i32_0 = arith.constant 0 : i32
    %c0_i32_1 = arith.constant 0 : i32
    return %c0_i32, %c0_i32_0 : i32, i32
  }
}

</mosaic_0001>

<llo_original>
// kernel: tpu_custom_call.1
$region0: #{tpu_custom_call.1}
  #allocation0 [shape = 'u32[]', space=smem, size = 0x4, offset = 0x4, fixed_abs, tag = 'smem constant byte address 0x4 - core index']
  #allocation1 [shape = 'u32[144,128]{1,0:T(1,128)}', space=vmem, size = 0x12000, scoped, tag = 'internal scratch']
  #allocation2 [shape = 'f32[1,1]{1,0:T(1,128)}', space=vmem, size = 0x200, scoped, tag = 'scratch operand']
  %s0 = inlined_call_operand.hbm [shape: f32[8,256], index: 0, kind: input, shape index: {}]
  %s1 = inlined_call_operand.hbm [shape: f32[8,256], index: 1, kind: input, shape index: {}]
  %s2 = inlined_call_operand.vmem [shape: f32[8,1], index: 2, kind: input, shape index: {}]
  %s3 = inlined_call_operand.hbm [shape: f32[1,1], index: 3, kind: output, shape index: {}]
  %s4 = sld [smem:[#allocation0]]
  $region38: #{tpu_custom_call.1} parent=0
    _
  %s6 = ssub.s32 1, %s4
  %s7 = scalar_select 0, %s6, %s4
  $region1: #{tpu_custom_call.1} parent=0
    #allocation3 [shape = 'u8[8192]{0}', space=vmem, size = 0x2000, scoped, tag = 'input window, operand 0, single buffered']
    #allocation4 [shape = 's32[1]{0}', space=sflag, size = 0x4, scoped, tag = 'scoped memory for tpu_custom_call.1']
    #allocation5 [shape = 's32[1]{0}', space=sflag, size = 0x4, scoped, tag = 'scoped memory for tpu_custom_call.1']
    #allocation6 [shape = 'u8[8192]{0}', space=vmem, size = 0x2000, scoped, tag = 'input window, operand 1, single buffered']
    #allocation7 [shape = 's32[1]{0}', space=sflag, size = 0x4, scoped, tag = 'scoped memory for tpu_custom_call.1']
    #allocation8 [shape = 'u8[512]{0}', space=vmem, size = 0x400, scoped, tag = 'output window, operand 0, single buffered']
    %8 = vsyncpa [#allocation4], 0
    %9 = vsyncpa [#allocation7], 0
    %10 = vsyncpa [#allocation5], 0
    // Predicated region
    $region2: #{tpu_custom_call.1} parent=1 // pred_check
      _
    $region3: #{tpu_custom_call.1} parent=1 // pred_check_branch
      %12 = sbr.rel (0) target = $region5
    $region4: #{tpu_custom_call.1} parent=1 // pred_region
      %s14 = ssub.s32 256, 256
      %15 = vsyncadd [#allocation4], %s14
      %s17 = sshll.u32 [#allocation3], 4
      %s18 = int_to_ptr.vmem [resolvable:$true] %s17
      %20 = dma.hbm_to_vmem [thread:$0]  %s0, 256, %s18, [#allocation4]
    $region5: #{tpu_custom_call.1} parent=1 // pred_fallthru
      _
    // Predicated region
    $region6: #{tpu_custom_call.1} parent=1 // pred_check
      _
    $region7: #{tpu_custom_call.1} parent=1 // pred_check_branch
      %22 = sbr.rel (0) target = $region9
    $region8: #{tpu_custom_call.1} parent=1 // pred_region
      %s24 = ssub.s32 256, 256
      %25 = vsyncadd [#allocation7], %s24
      %s27 = sshll.u32 [#allocation6], 4
      %s28 = int_to_ptr.vmem [resolvable:$true] %s27
      %30 = dma.hbm_to_vmem [thread:$0]  %s1, 256, %s28, [#allocation7]
    $region9: #{tpu_custom_call.1} parent=1 // pred_fallthru
      _
    // Predicated region
    $region10: #{tpu_custom_call.1} parent=1 // pred_check
      _
    $region11: #{tpu_custom_call.1} parent=1 // pred_check_branch
      %32 = sbr.rel (0) target = $region13
    $region12: #{tpu_custom_call.1} parent=1 // pred_region
      _
    $region13: #{tpu_custom_call.1} parent=1 // pred_fallthru
      _
    // Predicated region
    $region14: #{tpu_custom_call.1} parent=1 // pred_check
      _
    $region15: #{tpu_custom_call.1} parent=1 // pred_check_branch
      %34 = sbr.rel (0) target = $region17
    $region16: #{tpu_custom_call.1} parent=1 // pred_region
      %35 = dma.done [#allocation4], 256
    $region17: #{tpu_custom_call.1} parent=1 // pred_fallthru
      _
    // Predicated region
    $region18: #{tpu_custom_call.1} parent=1 // pred_check
      _
    $region19: #{tpu_custom_call.1} parent=1 // pred_check_branch
      %37 = sbr.rel (0) target = $region21
    $region20: #{tpu_custom_call.1} parent=1 // pred_region
      %38 = dma.done [#allocation7], 256
    $region21: #{tpu_custom_call.1} parent=1 // pred_fallthru
      _
    %p39 = scmp.eq.s32.totalorder 0, 0
    %p40 = scmp.eq.s32.totalorder 0, 0
    %p41 = pnand %p39, %p40
    %p42 = pneg %p41
    // Predicated region
    $region22: #{tpu_custom_call.1} parent=1 // pred_check
      _
    $region23: #{tpu_custom_call.1} parent=1 // pred_check_branch
      %44 = sbr.rel (%p41) target = $region25
    $region24: #{tpu_custom_call.1} parent=1 // pred_region
      %vm45 = vcmask 0
      %46 = vst.msk [vmem:[#allocation2] sm:$0x1] %vm45, 0.0
    $region25: #{tpu_custom_call.1} parent=1 // pred_fallthru
      _
    %v47 = vld [vmem:[#allocation3] sm:$0xff]
    %v48 = vld [vmem:[#allocation3 + $0x8] sm:$0xff]
    %v49 = vld [vmem:[#allocation6] sm:$0xff]
    %v50 = vld [vmem:[#allocation6 + $0x8] sm:$0xff]
    %v51 = vsub.f32 %v47, %v49
    %v52 = vsub.f32 %v48, %v50
    %v53 = vand.u32 2147483647, %v51
    %v54 = vand.u32 2147483647, %v52
    %vm55 = vcmp.lt.f32.partialorder %v53, 1.0
    %vm56 = vcmp.lt.f32.partialorder %v54, 1.0
    %v57 = vmul.f32 %v53, 0.5
    %v58 = vmul.f32 %v54, 0.5
    %v59 = vmul.f32 %v57, %v53
    %v60 = vmul.f32 %v58, %v54
    %v61 = vsub.f32 %v53, 0.5
    %v62 = vsub.f32 %v54, 0.5
    %v63 = vsel %vm55, %v59, %v61
    %v64 = vsel %vm56, %v60, %v62
    %v65 = vld [vmem:[%s2] sm:$0xff]
    %67 = vset.pattern.permute.xlu0 0
    %68 = vperm.xlu0 %67, %v65
    %v69 = vpop.permute.xlu0 %68
    %v71 = vmul.f32 %v63, %v69
    %v72 = vmul.f32 %v64, %v69
    %v73 = vld [vmem:[#allocation2] sm:$0x1]
    %v74 = vadd.f32 %v71, %v72
    %75 = vadd.xlane.f32.xlu0 %v74
    %v76 = vpop.xlane.xlu0 %75
    %v77 = vrot.slane %v76, 4
    %v78 = vadd.f32 %v76, %v77
    %v79 = vrot.slane %v78, 2
    %v80 = vadd.f32 %v78, %v79
    %v81 = vrot.slane %v80, 1
    %v82 = vadd.f32 %v80, %v81
    %s83 = vtos %v82
    %v84 = vstv %s83
    %v85 = vadd.f32 %v73, %v84
    %vm86 = vcmask 0
    %87 = vst.msk [vmem:[#allocation2] sm:$0x1] %vm86, %v85
    // Predicated region
    $region26: #{tpu_custom_call.1} parent=1 // pred_check
      _
    $region27: #{tpu_custom_call.1} parent=1 // pred_check_branch
      %89 = sbr.rel (%p41) target = $region29
    $region28: #{tpu_custom_call.1} parent=1 // pred_region
      %v90 = vld [vmem:[#allocation2] sm:$0x1]
      %v91 = vmul.f32 %v90, 0.00048828125
      %92 = vst.msk [vmem:[#allocation8] sm:$0x1] %vm86, %v91
    $region29: #{tpu_custom_call.1} parent=1 // pred_fallthru
      _
    // Predicated region
    $region30: #{tpu_custom_call.1} parent=1 // pred_check
      _
    $region31: #{tpu_custom_call.1} parent=1 // pred_check_branch
      %94 = sbr.rel (0) target = $region33
    $region32: #{tpu_custom_call.1} parent=1 // pred_region
      %s96 = ssub.s32 16, 16
      %97 = vsyncadd [#allocation5], %s96
      %s99 = sshll.u32 [#allocation8], 4
      %s100 = int_to_ptr.vmem [resolvable:$true] %s99
      %102 = dma.vmem_to_hbm [thread:$0]  %s100, 16, %s3, [#allocation5]
    $region33: #{tpu_custom_call.1} parent=1 // pred_fallthru
      _
    // Predicated region
    $region34: #{tpu_custom_call.1} parent=1 // pred_check
      _
    $region35: #{tpu_custom_call.1} parent=1 // pred_check_branch
      %104 = sbr.rel (0) target = $region37
    $region36: #{tpu_custom_call.1} parent=1 // pred_region
      %105 = dma.done [#allocation5], 16
    $region37: #{tpu_custom_call.1} parent=1 // pred_fallthru
      _
    %106 = vsyncpa [#allocation4], 1
    %107 = vsyncpa [#allocation7], 1
    %108 = vsyncpa [#allocation5], 1

</llo_original>
